<compile_context>
chip_gen: v5e
topology: v5e:2x2
jax: 0.10.0
libtpu: 0.0.40
codegen_flags: <defaults>
</compile_context>

<pallas_src>
import functools

import numpy as np
import jax
import jax.numpy as jnp
from jax.experimental import pallas as pl
from jax.experimental.pallas import tpu as pltpu


def _round_up(x, m):
    return ((x + m - 1) // m) * m


# ---------------------------------------------------------------------------
# Fused EdgeModel kernel (feature-major: lane axis = edges)
# ---------------------------------------------------------------------------
def _edge_mlp_kernel(xT_ref, w1T_ref, b1_ref, w2T_ref, b2_ref, oT_ref):
    # h^T = W1^T @ x^T   -> (hidden, tile_n), f32 accumulation on the MXU.
    h = jnp.dot(w1T_ref[...], xT_ref[...], preferred_element_type=jnp.float32)
    h = jnp.maximum(h + b1_ref[...], 0.0)           # bias + ReLU in f32 (VPU)
    h = h.astype(w2T_ref.dtype)                     # back to compute dtype for 2nd MXU pass
    # out^T = W2^T @ h^T -> (targets, tile_n); no trailing ReLU (matches the Sequential).
    y = jnp.dot(w2T_ref[...], h, preferred_element_type=jnp.float32)
    oT_ref[...] = (y + b2_ref[...]).astype(oT_ref.dtype)


# ---------------------------------------------------------------------------
# One-time parameter prep (hoisted out of the per-call path)
# ---------------------------------------------------------------------------
def prepare_edge_model_params(params, compute_dtype=jnp.float32):
    """Transpose/cast weights once; biases kept f32 (added after f32 accumulation)."""
    w1, b1, w2, b2 = params
    w1T = jnp.asarray(w1.T, compute_dtype)              # (hidden, 2F+E)
    w2T = jnp.asarray(w2.T, compute_dtype)              # (targets, hidden)
    b1c = jnp.asarray(b1, jnp.float32).reshape(-1, 1)   # (hidden, 1)
    b2c = jnp.asarray(b2, jnp.float32).reshape(-1, 1)   # (targets, 1)
    return w1T, b1c, w2T, b2c


# ---------------------------------------------------------------------------
# Forward wrapper
# ---------------------------------------------------------------------------
@functools.partial(jax.jit, static_argnames=("row_tile",))
def edge_model_forward(prepared, src, dest, edge_attr, row_tile=1024):
    """EdgeModel.forward: edge_mlp(cat([src, dest, edge_attr], dim=1))."""
    w1T, b1c, w2T, b2c = prepared
    n = src.shape[0]
    k_in = w1T.shape[1]          # 2F + E
    n_hidden = w1T.shape[0]
    n_out = w2T.shape[0]
    compute_dtype = w1T.dtype

    # Edge tile: always a multiple of 128 so the lane (edge) axis is dense.
    tile = min(row_tile, _round_up(n, 128))
    tile = _round_up(tile, 128)
    n_pad = _round_up(n, tile)

    # Single fused XLA producer: concat (== torch.cat) -> cast -> transpose -> zero-pad.
    x = jnp.concatenate([src, dest, edge_attr], axis=1).astype(compute_dtype)   # (n, K)
    xT = jnp.pad(x.T, ((0, 0), (0, n_pad - n)))                                 # (K, n_pad)

    grid = (n_pad // tile,)
    oT = pl.pallas_call(
        _edge_mlp_kernel,
        out_shape=jax.ShapeDtypeStruct((n_out, n_pad), jnp.float32),
        grid_spec=pltpu.PrefetchScalarGridSpec(
            num_scalar_prefetch=0,
            grid=grid,
            in_specs=[
                pl.BlockSpec((k_in, tile), lambda i: (0, i)),      # activation tile
                pl.BlockSpec((n_hidden, k_in), lambda i: (0, 0)),  # W1^T  (VMEM-resident)
                pl.BlockSpec((n_hidden, 1), lambda i: (0, 0)),     # b1
                pl.BlockSpec((n_out, n_hidden), lambda i: (0, 0)),  # W2^T
                pl.BlockSpec((n_out, 1), lambda i: (0, 0)),        # b2
            ],
            out_specs=pl.BlockSpec((n_out, tile), lambda i: (0, i)),
        ),
        compiler_params=pltpu.CompilerParams(
            # Edge axis is embarrassingly parallel -> shard across v7x's 2 TensorCores.
            dimension_semantics=("parallel",),
            # Explicit, conservative scoped-VMEM cap (safe on v7x's 64 MiB physical).
            vmem_limit_bytes=32 * 1024 * 1024,
        ),
    )(xT, w1T, b1c, w2T, b2c)

    # Drop row padding and return the module's (n_edges, n_targets) layout.
    return oT[:, :n].T


# ---------------------------------------------------------------------------
# Parameter init (matches nn.Linear default init)
# ---------------------------------------------------------------------------
def init_linear(key, n_in, n_out):
    kw, kb = jax.random.split(key)
    bound = 1.0 / np.sqrt(n_in)
    w = jax.random.uniform(kw, (n_in, n_out), jnp.float32, -bound, bound)
    b = jax.random.uniform(kb, (n_out,), jnp.float32, -bound, bound)
    return w, b


def init_edge_model(key, n_features, n_edge_features, hiddens, n_targets):
    k1, k2 = jax.random.split(key)
    w1, b1 = init_linear(k1, 2 * n_features + n_edge_features, hiddens)
    w2, b2 = init_linear(k2, hiddens, n_targets)
    return (w1, b1, w2, b2)


# ---------------------------------------------------------------------------
# Main
# ---------------------------------------------------------------------------
if __name__ == "__main__":
    key = jax.random.PRNGKey(0)

    n_features = 4
    n_edge_features = 6
    hiddens = 32
    n_targets = 5
    n_edges = 20

    key, kp = jax.random.split(key)
    params = init_edge_model(kp, n_features, n_edge_features, hiddens, n_targets)
    w1, b1, w2, b2 = params

    k1, k2, k3, k4 = jax.random.split(key, 4)
    src = jax.random.normal(k1, (n_edges, n_features), jnp.float32)
    dest = jax.random.normal(k2, (n_edges, n_features), jnp.float32)
    edge_attr = jax.random.normal(k3, (n_edges, n_edge_features), jnp.float32)

    def ref_fn(s, d, e):
        xc = jnp.concatenate([s, d, e], axis=1)
        return jnp.maximum(xc @ w1 + b1, 0.0) @ w2 + b2

    # --- f32 path (exact match to the PyTorch module) ------------------------
    prep_f32 = prepare_edge_model_params(params, jnp.float32)
    out = jax.block_until_ready(edge_model_forward(prep_f32, src, dest, edge_attr))
    assert out.shape == (n_edges, n_targets)
    np.testing.assert_allclose(np.asarray(out), np.asarray(ref_fn(src, dest, edge_attr)),
                               rtol=1e-5, atol=1e-5)

    # --- multi-tile path (grid > 1, row padding exercised) --------------------
    n_big = 300
    kb1, kb2, kb3 = jax.random.split(k4, 3)
    src_b = jax.random.normal(kb1, (n_big, n_features), jnp.float32)
    dest_b = jax.random.normal(kb2, (n_big, n_features), jnp.float32)
    edge_b = jax.random.normal(kb3, (n_big, n_edge_features), jnp.float32)
    out_b = jax.block_until_ready(
        edge_model_forward(prep_f32, src_b, dest_b, edge_b, row_tile=128))
    np.testing.assert_allclose(np.asarray(out_b),
                               np.asarray(ref_fn(src_b, dest_b, edge_b)),
                               rtol=1e-5, atol=1e-5)

    # --- bf16 compute, f32 accumulation (checked against a matching bf16 ref) -
    prep_bf16 = prepare_edge_model_params(params, jnp.bfloat16)
    out_bf16 = jax.block_until_ready(edge_model_forward(prep_bf16, src, dest, edge_attr))

    def ref_bf16(s, d, e):
        xc = jnp.concatenate([s, d, e], axis=1).astype(jnp.bfloat16)
        hh = jnp.dot(xc, w1.astype(jnp.bfloat16), preferred_element_type=jnp.float32)
        hh = jnp.maximum(hh + b1, 0.0).astype(jnp.bfloat16)
        return jnp.dot(hh, w2.astype(jnp.bfloat16), preferred_element_type=jnp.float32) + b2

    np.testing.assert_allclose(np.asarray(out_bf16),
                               np.asarray(ref_bf16(src, dest, edge_attr)),
                               rtol=1e-2, atol=1e-2)

    print("KERNEL_OK")
</pallas_src>

<mosaic_0001>
module attributes {stable_mosaic.version = 11 : i64} {
  func.func @_edge_mlp_kernel(%arg0: i32, %arg1: memref<14x128xf32, #tpu.memory_space<vmem>>, %arg2: memref<32x14xf32, #tpu.memory_space<vmem>>, %arg3: memref<32x1xf32, #tpu.memory_space<vmem>>, %arg4: memref<5x32xf32, #tpu.memory_space<vmem>>, %arg5: memref<5x1xf32, #tpu.memory_space<vmem>>, %arg6: memref<5x128xf32, #tpu.memory_space<vmem>>) attributes {dimension_semantics = [#tpu.dimension_semantics<parallel>], iteration_bounds = array<i64: 1>, scalar_prefetch = 0 : i64, scratch_operands = 0 : i64, tpu.core_type = #tpu.core_type<tc>, window_params = [{transform_indices = @transform_0, window_bounds = array<i64: 14, 128>}, {pipeline_mode = #tpu.pipeline_mode<synchronous>, transform_indices = @transform_1, window_bounds = array<i64: 32, 14>}, {pipeline_mode = #tpu.pipeline_mode<synchronous>, transform_indices = @transform_2, window_bounds = array<i64: 32, 1>}, {pipeline_mode = #tpu.pipeline_mode<synchronous>, transform_indices = @transform_3, window_bounds = array<i64: 5, 32>}, {pipeline_mode = #tpu.pipeline_mode<synchronous>, transform_indices = @transform_4, window_bounds = array<i64: 5, 1>}, {transform_indices = @transform_5, window_bounds = array<i64: 5, 128>}]} {
    %c0 = arith.constant 0 : index
    %c0_0 = arith.constant 0 : index
    %0 = vector.load %arg2[%c0, %c0_0] : memref<32x14xf32, #tpu.memory_space<vmem>>, vector<32x14xf32>
    %c0_1 = arith.constant 0 : index
    %c0_2 = arith.constant 0 : index
    %1 = vector.load %arg1[%c0_1, %c0_2] : memref<14x128xf32, #tpu.memory_space<vmem>>, vector<14x128xf32>
    %cst = arith.constant dense<0.000000e+00> : vector<32x128xf32>
    %2 = tpu.matmul %0, %1, %cst {dimension_numbers = #tpu.dot_dimension_numbers<[1], [0], [0], [1], [0, 0, 1, 1], [], []>} : vector<32x14xf32>, vector<14x128xf32>, vector<32x128xf32> -> vector<32x128xf32>
    %c0_3 = arith.constant 0 : index
    %c0_4 = arith.constant 0 : index
    %3 = vector.load %arg3[%c0_3, %c0_4] : memref<32x1xf32, #tpu.memory_space<vmem>>, vector<32x1xf32>
    %4 = vector.broadcast %3 : vector<32x1xf32> to vector<32x128xf32>
    %5 = arith.addf %2, %4 : vector<32x128xf32>
    %cst_5 = arith.constant 0.000000e+00 : f32
    %6 = vector.broadcast %cst_5 : f32 to vector<32x128xf32>
    %7 = arith.maximumf %5, %6 : vector<32x128xf32>
    %c0_6 = arith.constant 0 : index
    %c0_7 = arith.constant 0 : index
    %8 = vector.load %arg4[%c0_6, %c0_7] : memref<5x32xf32, #tpu.memory_space<vmem>>, vector<5x32xf32>
    %cst_8 = arith.constant dense<0.000000e+00> : vector<5x128xf32>
    %9 = tpu.matmul %8, %7, %cst_8 {dimension_numbers = #tpu.dot_dimension_numbers<[1], [0], [0], [1], [0, 0, 1, 1], [], []>} : vector<5x32xf32>, vector<32x128xf32>, vector<5x128xf32> -> vector<5x128xf32>
    %c0_9 = arith.constant 0 : index
    %c0_10 = arith.constant 0 : index
    %10 = vector.load %arg5[%c0_9, %c0_10] : memref<5x1xf32, #tpu.memory_space<vmem>>, vector<5x1xf32>
    %11 = vector.broadcast %10 : vector<5x1xf32> to vector<5x128xf32>
    %12 = arith.addf %9, %11 : vector<5x128xf32>
    %c0_11 = arith.constant 0 : index
    %c0_12 = arith.constant 0 : index
    %13 = vector.load %arg6[%c0_11, %c0_12] : memref<5x128xf32, #tpu.memory_space<vmem>>, vector<5x128xf32>
    tpu.vector_store %arg6[%c0_11, %c0_12], %12 {strides = array<i32>} : memref<5x128xf32, #tpu.memory_space<vmem>>, vector<5x128xf32>,
    return
  }
  func.func @transform_0(%arg0: i32) -> (i32, i32) {
    %c0_i32 = arith.constant 0 : i32
    %c0_i32_0 = arith.constant 0 : i32
    return %c0_i32, %arg0 : i32, i32
  }
  func.func @transform_1(%arg0: i32) -> (i32, i32) {
    %c0_i32 = arith.constant 0 : i32
    %c0_i32_0 = arith.constant 0 : i32
    %c0_i32_1 = arith.constant 0 : i32
    return %c0_i32, %c0_i32_0 : i32, i32
  }
  func.func @transform_2(%arg0: i32) -> (i32, i32) {
    %c0_i32 = arith.constant 0 : i32
    %c0_i32_0 = arith.constant 0 : i32
    %c0_i32_1 = arith.constant 0 : i32
    return %c0_i32, %c0_i32_0 : i32, i32
  }
  func.func @transform_3(%arg0: i32) -> (i32, i32) {
    %c0_i32 = arith.constant 0 : i32
    %c0_i32_0 = arith.constant 0 : i32
    %c0_i32_1 = arith.constant 0 : i32
    return %c0_i32, %c0_i32_0 : i32, i32
  }
  func.func @transform_4(%arg0: i32) -> (i32, i32) {
    %c0_i32 = arith.constant 0 : i32
    %c0_i32_0 = arith.constant 0 : i32
    %c0_i32_1 = arith.constant 0 : i32
    return %c0_i32, %c0_i32_0 : i32, i32
  }
  func.func @transform_5(%arg0: i32) -> (i32, i32) {
    %c0_i32 = arith.constant 0 : i32
    %c0_i32_0 = arith.constant 0 : i32
    return %c0_i32, %arg0 : i32, i32
  }
}

</mosaic_0001>

<llo_original>
// kernel: edge_model_forward.1
$region0: #{edge_model_forward.1}
  #allocation0 [shape = 'u32[]', space=smem, size = 0x4, offset = 0x4, fixed_abs, tag = 'smem constant byte address 0x4 - core index']
  #allocation1 [shape = 'u32[72,128]{1,0:T(1,128)}', space=vmem, size = 0x9000, scoped, tag = 'internal scratch']
  %s0 = inlined_call_operand.vmem [shape: f32[14,128], index: 0, kind: input, shape index: {}]
  %s1 = inlined_call_operand.vmem [shape: f32[32,14], index: 1, kind: input, shape index: {}]
  %s2 = inlined_call_operand.vmem [shape: f32[32,1], index: 2, kind: input, shape index: {}]
  %s3 = inlined_call_operand.vmem [shape: f32[5,32], index: 3, kind: input, shape index: {}]
  %s4 = inlined_call_operand.vmem [shape: f32[5,1], index: 4, kind: input, shape index: {}]
  %s5 = inlined_call_operand.vmem [shape: f32[5,128], index: 5, kind: output, shape index: {}]
  %s6 = sld [smem:[#allocation0]]
  $region30: #{edge_model_forward.1} parent=0
    _
  %s8 = ssub.s32 1, %s6
  %s9 = scalar_select 0, %s8, %s6
  // Predicated region
  $region2: #{edge_model_forward.1} parent=0 // pred_check
    _
  $region3: #{edge_model_forward.1} parent=0 // pred_check_branch
    %11 = sbr.rel (0) target = $region5
  $region4: #{edge_model_forward.1} parent=0 // pred_region
    _
  $region5: #{edge_model_forward.1} parent=0 // pred_fallthru
    _
  // Predicated region
  $region6: #{edge_model_forward.1} parent=0 // pred_check
    _
  $region7: #{edge_model_forward.1} parent=0 // pred_check_branch
    %13 = sbr.rel (0) target = $region9
  $region8: #{edge_model_forward.1} parent=0 // pred_region
    _
  $region9: #{edge_model_forward.1} parent=0 // pred_fallthru
    _
  // Predicated region
  $region10: #{edge_model_forward.1} parent=0 // pred_check
    _
  $region11: #{edge_model_forward.1} parent=0 // pred_check_branch
    %15 = sbr.rel (0) target = $region13
  $region12: #{edge_model_forward.1} parent=0 // pred_region
    _
  $region13: #{edge_model_forward.1} parent=0 // pred_fallthru
    _
  // Predicated region
  $region14: #{edge_model_forward.1} parent=0 // pred_check
    _
  $region15: #{edge_model_forward.1} parent=0 // pred_check_branch
    %17 = sbr.rel (0) target = $region17
  $region16: #{edge_model_forward.1} parent=0 // pred_region
    _
  $region17: #{edge_model_forward.1} parent=0 // pred_fallthru
    _
  // Predicated region
  $region18: #{edge_model_forward.1} parent=0 // pred_check
    _
  $region19: #{edge_model_forward.1} parent=0 // pred_check_branch
    %19 = sbr.rel (0) target = $region21
  $region20: #{edge_model_forward.1} parent=0 // pred_region
    _
  $region21: #{edge_model_forward.1} parent=0 // pred_fallthru
    _
  %v20 = vld [vmem:[%s1] sm:$0xff]
  %v21 = vld [vmem:[%s1 + $0x8] sm:$0xff]
  %v22 = vld [vmem:[%s1 + $0x10] sm:$0xff]
  %v23 = vld [vmem:[%s1 + $0x18] sm:$0xff]
  %v24 = vld [vmem:[%s0] sm:$0xff]
  %v25 = vld [vmem:[%s0 + $0x8] sm:$0x3f]
  %v26 = vld [vmem:[%s2] sm:$0xff]
  %v27 = vld [vmem:[%s2 + $0x8] sm:$0xff]
  %v28 = vld [vmem:[%s2 + $0x10] sm:$0xff]
  %v29 = vld [vmem:[%s2 + $0x18] sm:$0xff]
  %31 = vset.pattern.permute.xlu0 0
  %32 = vperm.xlu0 %31, %v26
  %v33 = vpop.permute.xlu0 %32
  %36 = vset.pattern.permute.xlu0 0
  %37 = vperm.xlu0 %36, %v27
  %v38 = vpop.permute.xlu0 %37
  %41 = vset.pattern.permute.xlu0 0
  %42 = vperm.xlu0 %41, %v28
  %v43 = vpop.permute.xlu0 %42
  %46 = vset.pattern.permute.xlu0 0
  %47 = vperm.xlu0 %46, %v29
  %v48 = vpop.permute.xlu0 %47
  %vm50 = vcmask 113664
  %v52 = vsel %vm50, %v20, 0
  %v55 = vsel %vm50, %v21, 0
  %v58 = vsel %vm50, %v22, 0
  %v61 = vsel %vm50, %v23, 0
  %vm63 = vcmask 1045504
  %v65 = vsel %vm63, %v25, 0
  %67 = vmatpush.msra.mxu0 0.0
  %68 = vmatpush.msra.mxu0 0.0
  %69 = vmatpush.msra.mxu0 0.0
  %70 = vmatpush.msra.mxu0 0.0
  %71 = vmatpush.msra.mxu0 0.0
  %72 = vmatpush.msra.mxu0 0.0
  %73 = vmatpush.msra.mxu0 0.0
  %74 = vmatpush.msra.mxu0 0.0
  %75 = vmatpush.msra.mxu0 0.0
  %76 = vmatpush.msra.mxu0 0.0
  %77 = vmatpush.msra.mxu0 0.0
  %78 = vmatpush.msra.mxu0 0.0
  %79 = vmatpush.msra.mxu0 0.0
  %80 = vmatpush.msra.mxu0 0.0
  %81 = vmatpush.msra.mxu0 %v65
  %82 = vmatpush.msra.mxu0 %v24
  %83 = vmatmul.f32.gmra.mxu0 %v52
  %v84 = vpop.f32.mrf.mxu0
  %v85 = vadd.f32 %v33, %v84
  %86 = vmatmul.f32.gmra.mxu0 %v55
  %v87 = vpop.f32.mrf.mxu0
  %v88 = vadd.f32 %v38, %v87
  %89 = vmatmul.f32.gmra.mxu0 %v58
  %v90 = vpop.f32.mrf.mxu0
  %v91 = vadd.f32 %v43, %v90
  %92 = vmatmul.f32.gmra.mxu0 %v61
  %v93 = vpop.f32.mrf.mxu0
  %v94 = vadd.f32 %v48, %v93
  %95 = vdwg.mxu0
  %v96 = vmax.f32 %v85, 0.0
  %v97 = vmax.f32 %v88, 0.0
  %v98 = vmax.f32 %v91, 0.0
  %v99 = vmax.f32 %v94, 0.0
  %v100 = vld [vmem:[%s3] sm:$0x1f]
  %v101 = vld [vmem:[%s4] sm:$0x1f]
  %103 = vset.pattern.permute.xlu0 0
  %104 = vperm.xlu0 %103, %v101
  %v105 = vpop.permute.xlu0 %104
  %vm107 = vcmask 261120
  %v109 = vsel %vm107, %v100, 0
  %111 = vmatpush.msra.mxu0 0.0
  %112 = vmatpush.msra.mxu0 0.0
  %113 = vmatpush.msra.mxu0 0.0
  %114 = vmatpush.msra.mxu0 0.0
  %115 = vmatpush.msra.mxu0 0.0
  %116 = vmatpush.msra.mxu0 0.0
  %117 = vmatpush.msra.mxu0 0.0
  %118 = vmatpush.msra.mxu0 0.0
  %119 = vmatpush.msra.mxu0 0.0
  %120 = vmatpush.msra.mxu0 0.0
  %121 = vmatpush.msra.mxu0 0.0
  %122 = vmatpush.msra.mxu0 0.0
  %123 = vmatpush.msra.mxu0 %v99
  %124 = vmatpush.msra.mxu0 %v98
  %125 = vmatpush.msra.mxu0 %v97
  %126 = vmatpush.msra.mxu0 %v96
  %127 = vmatmul.f32.gmra.mxu0 %v109
  %v128 = vpop.f32.mrf.mxu0
  %v129 = vadd.f32 %v105, %v128
  %130 = vdwg.mxu0
  %131 = vst [vmem:[%s5] sm:$0x1f] %v129
  // Predicated region
  $region22: #{edge_model_forward.1} parent=0 // pred_check
    _
  $region23: #{edge_model_forward.1} parent=0 // pred_check_branch
    %133 = sbr.rel (0) target = $region25
  $region24: #{edge_model_forward.1} parent=0 // pred_region
    _
  $region25: #{edge_model_forward.1} parent=0 // pred_fallthru
    _
  // Predicated region
  $region26: #{edge_model_forward.1} parent=0 // pred_check
    _
  $region27: #{edge_model_forward.1} parent=0 // pred_check_branch
    %135 = sbr.rel (0) target = $region29
  $region28: #{edge_model_forward.1} parent=0 // pred_region
    _
  $region29: #{edge_model_forward.1} parent=0 // pred_fallthru
    _

</llo_original>
